<compile_context>
chip_gen: v7x
topology: tpu7x:2x2x1
jax: 0.10.0
libtpu: 0.0.40
codegen_flags: <defaults>
</compile_context>

<pallas_src>
import jax
import jax.numpy as jnp
from jax.experimental import pallas as pl
from jax.experimental.pallas import tpu as pltpu


def _identity_kernel(x_ref, o_ref):
    # Entire compute path of BaseModel.forward (none specified) -> identity.
    o_ref[...] = x_ref[...]


_LANE = 128
_WIDTHS = (4096, 2048, 1024, 512, 256, 128)   # lane-dense candidate widths
_TARGET_BLOCK_BYTES = 4 * 1024 * 1024         # ~4 MiB per block (in+out x2 buf = 16 MiB)
_VMEM_LIMIT_BYTES = 32 * 1024 * 1024          # safe scoped VMEM on v5e/v6e/v7x


@jax.jit
def base_model_forward(x: jax.Array) -> jax.Array:
    """Pallas 'forward' for BaseModel: identity pass-through."""
    orig_shape = x.shape
    n = x.size
    if n == 0:
        return x

    itemsize = jnp.dtype(x.dtype).itemsize
    sub = max(8, 32 // itemsize)  # dtype-aware sublane multiple (8/16/32)

    # --- choose a wide, lane-dense slab width; prefer one that needs no pad ---
    width, pad = None, 0
    for w in _WIDTHS:
        if n % w == 0:
            width, pad = w, 0
            break
    if width is None:
        thresh = max(8 * _LANE, n // 16)
        for w in _WIDTHS:
            p = (-n) % w
            if p <= thresh:
                width, pad = w, p
                break

    flat = x.reshape(-1)
    if pad:
        flat = jnp.pad(flat, (0, pad))
    rows = (n + pad) // width
    slab = flat.reshape(rows, width)

    # --- block sizing: ~4 MiB blocks, block_rows a multiple of the sublane ----
    target_rows = max(sub, (_TARGET_BLOCK_BYTES // (itemsize * width)) // sub * sub)
    block_rows = min(rows, target_rows)
    if block_rows < rows:
        block_rows = max(sub, (block_rows // sub) * sub)
    elif rows >= 2 * sub and rows * width * itemsize >= 2 * 1024 * 1024:
        # Split a single large block in two so both v7x TensorCores get work.
        block_rows = ((pl.cdiv(rows, 2) + sub - 1) // sub) * sub

    grid = (pl.cdiv(rows, block_rows),)   # ragged tail -> masked edge block

    out = pl.pallas_call(
        _identity_kernel,
        out_shape=jax.ShapeDtypeStruct(slab.shape, slab.dtype),
        grid_spec=pltpu.PrefetchScalarGridSpec(
            num_scalar_prefetch=0,
            grid=grid,
            in_specs=[pl.BlockSpec((block_rows, width), lambda i: (i, 0))],
            out_specs=pl.BlockSpec((block_rows, width), lambda i: (i, 0)),
        ),
        compiler_params=pltpu.CompilerParams(
            dimension_semantics=("parallel",),
            vmem_limit_bytes=_VMEM_LIMIT_BYTES,
        ),
        cost_estimate=pl.CostEstimate(
            flops=0, transcendentals=0, bytes_accessed=2 * n * itemsize),
        # Only alias when the slab is a fresh padded temporary; aliasing the
        # un-padded path would alias the caller's x and force a defensive copy.
        input_output_aliases={0: 0} if pad else {},
    )(slab)

    if pad:
        return out.reshape(-1)[:n].reshape(orig_shape)
    return out.reshape(orig_shape)


if __name__ == "__main__":
    key = jax.random.PRNGKey(0)
    # Small NCHW input consistent with a conv-style model interface.
    x = jax.random.normal(key, (2, 4, 16, 16), dtype=jnp.float32)

    y = base_model_forward(x)
    y = jax.block_until_ready(y)

    # Identity semantics check (no forward logic is defined in BaseModel).
    assert y.shape == x.shape and y.dtype == x.dtype
    assert bool(jnp.allclose(y, x))

    print("KERNEL_OK")
</pallas_src>

<mosaic_0001>
module attributes {stable_mosaic.version = 11 : i64} {
  func.func @_identity_kernel(%arg0: i32, %arg1: memref<1x2048xf32, #tpu.memory_space<vmem>>, %arg2: memref<1x2048xf32, #tpu.memory_space<vmem>>) attributes {dimension_semantics = [#tpu.dimension_semantics<parallel>], iteration_bounds = array<i64: 1>, scalar_prefetch = 0 : i64, scratch_operands = 0 : i64, tpu.core_type = #tpu.core_type<tc>, window_params = [{transform_indices = @transform_0, window_bounds = array<i64: 1, 2048>}, {transform_indices = @transform_1, window_bounds = array<i64: 1, 2048>}]} {
    %c0 = arith.constant 0 : index
    %c0_0 = arith.constant 0 : index
    %0 = vector.load %arg1[%c0, %c0_0] : memref<1x2048xf32, #tpu.memory_space<vmem>>, vector<1x2048xf32>
    %c0_1 = arith.constant 0 : index
    %c0_2 = arith.constant 0 : index
    %1 = vector.load %arg2[%c0_1, %c0_2] : memref<1x2048xf32, #tpu.memory_space<vmem>>, vector<1x2048xf32>
    tpu.vector_store %arg2[%c0_1, %c0_2], %0 {strides = array<i32>} : memref<1x2048xf32, #tpu.memory_space<vmem>>, vector<1x2048xf32>,
    return
  }
  func.func @transform_0(%arg0: i32) -> (i32, i32) {
    %c0_i32 = arith.constant 0 : i32
    %c0_i32_0 = arith.constant 0 : i32
    return %arg0, %c0_i32 : i32, i32
  }
  func.func @transform_1(%arg0: i32) -> (i32, i32) {
    %c0_i32 = arith.constant 0 : i32
    %c0_i32_0 = arith.constant 0 : i32
    return %arg0, %c0_i32 : i32, i32
  }
}

</mosaic_0001>

<llo_original>
// kernel: base_model_forward.1
$region0: #{base_model_forward.1}
  #allocation0 [shape = 'u32[]', space=smem, size = 0x4, offset = 0x4, fixed_abs, tag = 'smem constant byte address 0x4 - core index']
  #allocation1 [shape = 'u32[144,128]{1,0:T(1,128)}', space=vmem, size = 0x12000, scoped, tag = 'internal scratch']
  %s0 = inlined_call_operand.vmem [shape: f32[1,2048], index: 0, kind: input, shape index: {}]
  %s1 = inlined_call_operand.vmem [shape: f32[1,2048], index: 1, kind: output, shape index: {}]
  %s2 = sld [smem:[#allocation0]]
  $region14: #{base_model_forward.1} parent=0
    _
  %s4 = ssub.s32 1, %s2
  %s5 = scalar_select 0, %s4, %s2
  // Predicated region
  $region2: #{base_model_forward.1} parent=0 // pred_check
    _
  $region3: #{base_model_forward.1} parent=0 // pred_check_branch
    %7 = sbr.rel (0) target = $region5
  $region4: #{base_model_forward.1} parent=0 // pred_region
    _
  $region5: #{base_model_forward.1} parent=0 // pred_fallthru
    _
  %v8 = vld [vmem:[%s0] sm:$0xff]
  %v9 = vld [vmem:[%s0 + $0x8] sm:$0xff]
  %10 = vst [vmem:[%s1] sm:$0xff] %v8
  %11 = vst [vmem:[%s1 + $0x8] sm:$0xff] %v9
  // Predicated region
  $region6: #{base_model_forward.1} parent=0 // pred_check
    _
  $region7: #{base_model_forward.1} parent=0 // pred_check_branch
    %13 = sbr.rel (0) target = $region9
  $region8: #{base_model_forward.1} parent=0 // pred_region
    _
  $region9: #{base_model_forward.1} parent=0 // pred_fallthru
    _
  // Predicated region
  $region10: #{base_model_forward.1} parent=0 // pred_check
    _
  $region11: #{base_model_forward.1} parent=0 // pred_check_branch
    %15 = sbr.rel (0) target = $region13
  $region12: #{base_model_forward.1} parent=0 // pred_region
    _
  $region13: #{base_model_forward.1} parent=0 // pred_fallthru
    _

</llo_original>
